<compile_context>
chip_gen: v7x
topology: tpu7x:2x2x1
jax: 0.10.0
libtpu: 0.0.40
codegen_flags: <defaults>
</compile_context>

<pallas_src>
import functools

import jax
import jax.numpy as jnp
from jax import lax
from jax.experimental import pallas as pl
from jax.experimental.pallas import tpu as pltpu


def _round_up(v, m):
    return -(-v // m) * m


@functools.lru_cache(maxsize=None)
def _roll_is_jnp_like():
    """Probe pltpu.roll's rotate direction once with a tiny kernel (cached).

    Returns True if pltpu.roll follows jnp.roll semantics
    (out[i] = in[(i - shift) % L]).  Makes the main kernel robust either way.
    """
    def k(x_ref, o_ref):
        o_ref[...] = pltpu.roll(x_ref[...], shift=1, axis=1)

    x = jnp.tile(jnp.arange(128, dtype=jnp.float32)[None, :], (8, 1))
    y = pl.pallas_call(k, out_shape=jax.ShapeDtypeStruct((8, 128), jnp.float32))(x)
    return bool(jax.device_get(y)[0, 0] == 127.0)


def _conv3x3_kernel(xm_ref, xh_ref, w_ref, b_ref, o_ref, slab_ref,
                    *, tile_p, wp, c_in_pad, roll_like_jnp):
    """One (batch, pixel-tile) grid step of the K-packed 3x3 conv.

    xm_ref:   (C_in_pad, TILE_P)       main flattened pixel tile (aligned load)
    xh_ref:   (C_in_pad, HB)           128-aligned halo = start of next tile
    w_ref:    (C_out, 9*C_in_pad)      K-packed weights (resident)
    b_ref:    (C_out, 1)               bias (resident)
    o_ref:    (C_out, TILE_P)          conv output tile (lane-dense stores)
    slab_ref: (9*C_in_pad, TILE_P)     VMEM im2col slab scratch
    """
    # Contiguous halo'd window; both block loads are lane-aligned.
    xw = jnp.concatenate([xm_ref[...], xh_ref[...]], axis=1)
    width = xw.shape[1]

    # Build the im2col slab: per tap, an XLU roll (left shift by `off`) then an
    # aligned [:, :TILE_P] slice stored to an 8-aligned row block of the slab.
    for dy in range(3):
        for dx in range(3):
            off = dy * wp + dx                      # static flattened offset
            tap = dy * 3 + dx
            if off == 0:
                shifted = xw
            else:
                shift = (width - off) if roll_like_jnp else off
                shifted = pltpu.roll(xw, shift=shift, axis=1)
            slab_ref[tap * c_in_pad:(tap + 1) * c_in_pad, :] = shifted[:, :tile_p]

    # Single deep-K MXU matmul (K = 9*C_in_pad) + bias fused into the epilogue.
    acc = jnp.dot(w_ref[...], slab_ref[...], preferred_element_type=jnp.float32)
    o_ref[...] = (acc + b_ref[...].astype(jnp.float32)).astype(o_ref.dtype)


def _choose_tile(p_valid, hb, c_in_pad, c_out, n_batch):
    """Pick pixel-tile size (multiple of hb, hence of 128), generation-aware."""
    try:
        vmem_cap = int(getattr(pltpu.get_tpu_info(), "vmem_capacity_bytes",
                               128 << 20))
    except Exception:
        vmem_cap = 128 << 20
    budget = (vmem_cap * 3) // 8          # ~48 MiB on v5e/v6e, ~24 MiB on v7x
    cout_p = max(8, c_out)
    k_dim = 9 * c_in_pad
    # f32 bytes per pixel column: double-buffered main input + output, slab scratch
    per_col = 4 * (2 * c_in_pad + 2 * cout_p + k_dim)
    # fixed: double-buffered halo + resident weights/bias
    fixed = 4 * (2 * c_in_pad * hb + 2 * cout_p * (k_dim + 1))
    max_tile = (budget - fixed) // per_col
    max_tile = max(hb, (int(max_tile) // hb) * hb)
    hard_cap = max(hb, (8192 // hb) * hb)
    max_tile = min(max_tile, hard_cap)
    # v7x has 2 TensorCores: if batch alone can't feed both, make sure the
    # (parallel) pixel-tile axis has >= 2 steps.
    if n_batch == 1 and p_valid > 2 * hb:
        half = _round_up(-(-p_valid // 2), hb)
        max_tile = min(max_tile, max(hb, half))
    tile_p = min(max_tile, _round_up(p_valid, hb))
    pt = -(-p_valid // tile_p)
    return int(tile_p), int(pt), vmem_cap


@functools.partial(jax.jit, static_argnames=("up_scale", "roll_like_jnp"))
def _upsample_block_impl(x, weight, bias, up_scale, roll_like_jnp):
    n, c_in, h, w = x.shape
    c_out = weight.shape[0]
    r = up_scale
    assert c_out % (r * r) == 0

    wp = w + 2                              # padded row stride (flattened)
    p_valid = h * wp                        # flattened conv positions (2 junk cols/row)
    halo = 2 * wp + 2                       # max tap offset in flattened space
    hb = _round_up(halo, 128)               # 128-aligned halo block width
    c_in_pad = _round_up(max(c_in, 8), 8)   # sublane-aligned channel count

    tile_p, pt, vmem_cap = _choose_tile(p_valid, hb, c_in_pad, c_out, n)
    p_total = tile_p * pt
    l_pad = p_total + hb

    # --- single cheap host pass: spatial zero-pad + channel pad + flatten ----
    xp = jnp.pad(x, ((0, 0), (0, c_in_pad - c_in), (1, 1), (1, 1)))
    xf = xp.reshape(n, c_in_pad, (h + 2) * wp)
    xf = jnp.pad(xf, ((0, 0), (0, 0), (0, l_pad - xf.shape[-1])))

    # K-packed weights: weight[co,ci,dy,dx] -> w_packed[co, (dy*3+dx)*C_in_pad + ci]
    w_taps = jnp.transpose(weight, (2, 3, 0, 1)).reshape(9, c_out, c_in)
    w_taps = jnp.pad(w_taps, ((0, 0), (0, 0), (0, c_in_pad - c_in)))
    w_packed = jnp.transpose(w_taps, (1, 0, 2)).reshape(c_out, 9 * c_in_pad)
    b_col = bias.reshape(c_out, 1)

    kernel = functools.partial(_conv3x3_kernel, tile_p=tile_p, wp=wp,
                               c_in_pad=c_in_pad, roll_like_jnp=roll_like_jnp)

    # 5/8 of physical VMEM: 80 MiB on v5e/v6e (128 MiB), 40 MiB on v7x (64 MiB).
    vmem_limit = int(max(32 << 20, min((vmem_cap * 5) // 8, 96 << 20)))

    y = pl.pallas_call(
        kernel,
        out_shape=jax.ShapeDtypeStruct((n, c_out, p_total), x.dtype),
        grid_spec=pltpu.PrefetchScalarGridSpec(
            num_scalar_prefetch=0,
            grid=(n, pt),
            in_specs=[
                # main pixel tile (non-overlapping, blocked, auto-pipelined)
                pl.BlockSpec((None, c_in_pad, tile_p), lambda b, t: (b, 0, t)),
                # 128-aligned halo block = start of the next tile (same array)
                pl.BlockSpec((None, c_in_pad, hb),
                             lambda b, t: (b, 0, (t + 1) * (tile_p // hb))),
                # resident K-packed weights and bias
                pl.BlockSpec((c_out, 9 * c_in_pad), lambda b, t: (0, 0)),
                pl.BlockSpec((c_out, 1), lambda b, t: (0, 0)),
            ],
            # lane-dense output block: last (stored) dim is the large pixel tile
            out_specs=pl.BlockSpec((None, c_out, tile_p), lambda b, t: (b, 0, t)),
            scratch_shapes=[pltpu.VMEM((9 * c_in_pad, tile_p), jnp.float32)],
        ),
        compiler_params=pltpu.CompilerParams(
            dimension_semantics=("parallel", "parallel"),
            vmem_limit_bytes=vmem_limit,
        ),
    )(xf, xf, w_packed, b_col)

    # --- single post-kernel pass: drop junk/pad columns + pixel shuffle ------
    # TODO(synk): this slice+transpose is one extra fused XLA copy of the conv
    # output; when this block is chained, fuse it into the consumer's in_spec.
    y = y[:, :, :p_valid].reshape(n, c_out, h, wp)[:, :, :, :w]   # NCHW conv out
    c_o = c_out // (r * r)
    y = y.reshape(n, c_o, r, r, h, w)
    y = jnp.transpose(y, (0, 1, 4, 2, 5, 3))                      # (N, C_o, H, r, W, r)
    return y.reshape(n, c_o, h * r, w * r)


def upsample_block(x, weight, bias, up_scale):
    # Resolve the (cached) roll-direction probe eagerly, outside the jit trace.
    return _upsample_block_impl(x, weight, bias, up_scale, _roll_is_jnp_like())


if __name__ == "__main__":
    # Small shapes consistent with UpsampleBLock(in_channels=4, up_scale=2)
    N, C_in, H, W = 2, 4, 16, 16
    up_scale = 2
    C_out = C_in * up_scale ** 2

    key = jax.random.PRNGKey(0)
    kx, kw, kb = jax.random.split(key, 3)
    x = jax.random.normal(kx, (N, C_in, H, W), dtype=jnp.float32)
    fan_in = C_in * 3 * 3
    bound = 1.0 / (fan_in ** 0.5)
    weight = jax.random.uniform(kw, (C_out, C_in, 3, 3),
                                minval=-bound, maxval=bound, dtype=jnp.float32)
    bias = jax.random.uniform(kb, (C_out,), minval=-bound, maxval=bound,
                              dtype=jnp.float32)

    out = upsample_block(x, weight, bias, up_scale)
    out = jax.block_until_ready(out)
    assert out.shape == (N, C_in, H * up_scale, W * up_scale)

    # correctness check against pure-JAX reference conv + pixel shuffle
    ref_conv = lax.conv_general_dilated(
        x, weight, window_strides=(1, 1), padding=((1, 1), (1, 1)),
        dimension_numbers=("NCHW", "OIHW", "NCHW"),
        precision=lax.Precision.HIGHEST,
    ) + bias.reshape(1, C_out, 1, 1)
    rr = up_scale
    ref = ref_conv.reshape(N, C_in, rr, rr, H, W)
    ref = jnp.transpose(ref, (0, 1, 4, 2, 5, 3)).reshape(
        N, C_in, H * rr, W * rr)

    assert jnp.allclose(out, ref, atol=1e-3, rtol=1e-3), \
        float(jnp.max(jnp.abs(out - ref)))
    print("KERNEL_OK")
</pallas_src>

<mosaic_0001>
module attributes {stable_mosaic.version = 11 : i64} {
  func.func @k(%arg0: memref<8x128xf32, #tpu.memory_space<vmem>>, %arg1: memref<8x128xf32, #tpu.memory_space<vmem>>) attributes {dimension_semantics = [], scalar_prefetch = 0 : i64, scratch_operands = 0 : i64, tpu.core_type = #tpu.core_type<tc>} {
    %c0 = arith.constant 0 : index
    %c0_0 = arith.constant 0 : index
    %0 = vector.load %arg0[%c0, %c0_0] : memref<8x128xf32, #tpu.memory_space<vmem>>, vector<8x128xf32>
    %c1_i32 = arith.constant 1 : i32
    %1 = tpu.dynamic_rotate %0 by %c1_i32 dim 1 : vector<8x128xf32>, i32 -> vector<8x128xf32>
    %c0_1 = arith.constant 0 : index
    %c0_2 = arith.constant 0 : index
    %2 = vector.load %arg1[%c0_1, %c0_2] : memref<8x128xf32, #tpu.memory_space<vmem>>, vector<8x128xf32>
    tpu.vector_store %arg1[%c0_1, %c0_2], %1 {strides = array<i32>} : memref<8x128xf32, #tpu.memory_space<vmem>>, vector<8x128xf32>,
    return
  }
}

</mosaic_0001>

<llo_original>
// kernel: tpu_custom_call.1
$region0: #{tpu_custom_call.1}
  #allocation0 [shape = 'u32[]', space=smem, size = 0x4, offset = 0x4, fixed_abs, tag = 'smem constant byte address 0x4 - core index']
  #allocation1 [shape = 'u32[144,128]{1,0:T(1,128)}', space=vmem, size = 0x12000, scoped, tag = 'internal scratch']
  %s0 = inlined_call_operand.hbm [shape: f32[8,128], index: 0, kind: input, shape index: {}]
  %s1 = inlined_call_operand.hbm [shape: f32[8,128], index: 1, kind: output, shape index: {}]
  %s2 = sld [smem:[#allocation0]]
  $region18: #{tpu_custom_call.1} parent=0
    _
  %s4 = ssub.s32 1, %s2
  %s5 = scalar_select 0, %s4, %s2
  $region1: #{tpu_custom_call.1} parent=0
    #allocation2 [shape = 'u8[4096]{0}', space=vmem, size = 0x1000, scoped, tag = 'input window, operand 0, single buffered']
    #allocation3 [shape = 's32[1]{0}', space=sflag, size = 0x4, scoped, tag = 'scoped memory for tpu_custom_call.1']
    #allocation4 [shape = 's32[1]{0}', space=sflag, size = 0x4, scoped, tag = 'scoped memory for tpu_custom_call.1']
    #allocation5 [shape = 'u8[4096]{0}', space=vmem, size = 0x1000, scoped, tag = 'output window, operand 0, single buffered']
    %6 = vsyncpa [#allocation3], 0
    %7 = vsyncpa [#allocation4], 0
    // Predicated region
    $region2: #{tpu_custom_call.1} parent=1 // pred_check
      _
    $region3: #{tpu_custom_call.1} parent=1 // pred_check_branch
      %9 = sbr.rel (0) target = $region5
    $region4: #{tpu_custom_call.1} parent=1 // pred_region
      %s11 = ssub.s32 128, 128
      %12 = vsyncadd [#allocation3], %s11
      %s14 = sshll.u32 [#allocation2], 4
      %s15 = int_to_ptr.vmem [resolvable:$true] %s14
      %17 = dma.hbm_to_vmem [thread:$0]  %s0, 128, %s15, [#allocation3]
    $region5: #{tpu_custom_call.1} parent=1 // pred_fallthru
      _
    // Predicated region
    $region6: #{tpu_custom_call.1} parent=1 // pred_check
      _
    $region7: #{tpu_custom_call.1} parent=1 // pred_check_branch
      %19 = sbr.rel (0) target = $region9
    $region8: #{tpu_custom_call.1} parent=1 // pred_region
      %20 = dma.done [#allocation3], 128
    $region9: #{tpu_custom_call.1} parent=1 // pred_fallthru
      _
    %v21 = vld [vmem:[#allocation2] sm:$0xff]
    %22 = vrot.lane.b32.xlu0 %v21, 1
    %v23 = vpop.permute.xlu0 %22
    %24 = vst [vmem:[#allocation5] sm:$0xff] %v23
    // Predicated region
    $region10: #{tpu_custom_call.1} parent=1 // pred_check
      _
    $region11: #{tpu_custom_call.1} parent=1 // pred_check_branch
      %26 = sbr.rel (0) target = $region13
    $region12: #{tpu_custom_call.1} parent=1 // pred_region
      %s28 = ssub.s32 128, 128
      %29 = vsyncadd [#allocation4], %s28
      %s31 = sshll.u32 [#allocation5], 4
      %s32 = int_to_ptr.vmem [resolvable:$true] %s31
      %34 = dma.vmem_to_hbm [thread:$0]  %s32, 128, %s1, [#allocation4]
    $region13: #{tpu_custom_call.1} parent=1 // pred_fallthru
      _
    // Predicated region
    $region14: #{tpu_custom_call.1} parent=1 // pred_check
      _
    $region15: #{tpu_custom_call.1} parent=1 // pred_check_branch
      %36 = sbr.rel (0) target = $region17
    $region16: #{tpu_custom_call.1} parent=1 // pred_region
      %37 = dma.done [#allocation4], 128
    $region17: #{tpu_custom_call.1} parent=1 // pred_fallthru
      _
    %38 = vsyncpa [#allocation3], 1
    %39 = vsyncpa [#allocation4], 1

</llo_original>
